<compile_context>
chip_gen: v5e
topology: v5e:2x2
jax: 0.10.0
libtpu: 0.0.40
codegen_flags: <defaults>
</compile_context>

<pallas_src>
import functools

import jax
import jax.numpy as jnp
import numpy as np
from jax.experimental import pallas as pl
from jax.experimental.pallas import tpu as pltpu


def _round_up(v, m):
    return ((v + m - 1) // m) * m


def _make_kernel(F: int, C: int, T: int):
    def kernel(x_ref, wsel_ref, rhs_ref, bias_ref, bh_ref, bbody_ref, out_ref):
        nb = x_ref.shape[0]
        x = x_ref[...]                                        # (nb, T, C)

        # ---- attention logits on the MXU (one matmul, 3 useful columns) ----
        x2 = x.reshape(nb * T, C)                             # free reshape
        logits = jnp.dot(x2, wsel_ref[...],
                         preferred_element_type=jnp.float32)  # (nb*T, 128)
        logits = logits.reshape(nb, T, wsel_ref.shape[1])

        b_hand = bh_ref[0, 0]                                 # scalars from SMEM
        b_body = bbody_ref[0, 0]
        lr = logits[:, :, 0:1] + b_hand                       # (nb, T, 1)
        ll = logits[:, :, 1:2] + b_hand
        lb = logits[:, :, 2:3] + b_body

        # ---- softmax over time; hand = concat [right; left] along time ------
        m_h = jnp.maximum(jnp.max(lr, axis=1, keepdims=True),
                          jnp.max(ll, axis=1, keepdims=True))
        er = jnp.exp(lr - m_h)
        el = jnp.exp(ll - m_h)
        # Exact reciprocal (pl.reciprocal(approx=True) was considered but kept
        # exact to preserve 1e-4 parity; op count here is only nb values).
        inv_h = 1.0 / (jnp.sum(er, axis=1, keepdims=True)
                       + jnp.sum(el, axis=1, keepdims=True))
        a_r = er * inv_h                                      # (nb, T, 1)
        a_l = el * inv_h

        m_b = jnp.max(lb, axis=1, keepdims=True)
        eb = jnp.exp(lb - m_b)
        a_b = eb * (1.0 / jnp.sum(eb, axis=1, keepdims=True))

        # ---- weight the full C lanes once, reduce over time -----------------
        lane = jax.lax.broadcasted_iota(jnp.int32, (1, 1, C), 2)
        attn = jnp.where(lane < F, a_r, jnp.where(lane < 2 * F, a_l, a_b))
        s = jnp.sum(x * attn, axis=1)                         # (nb, C)

        # TODO(synk): dropout is a no-op here (eval-mode semantics); training
        # mode would use pltpu.prng_seed + pltpu.stateful_bernoulli.

        # ---- fused heads: one matmul, one lane-dense 128-wide output --------
        out_ref[...] = (jnp.dot(s, rhs_ref[...],
                                preferred_element_type=jnp.float32)
                        + bias_ref[...])

    return kernel


def _build_constants(params, F, NC, inter_dist):
    """Precompute the logit selector, fused head RHS, fused bias and slices."""
    C = 3 * F
    wh = params["w_hand"][0]            # (F,)
    wb = params["w_body"][0]            # (F,)

    wsel = jnp.zeros((C, 128), jnp.float32)
    wsel = wsel.at[0:F, 0].set(wh)
    wsel = wsel.at[F:2 * F, 1].set(wh)
    wsel = wsel.at[2 * F:3 * F, 2].set(wb)

    if inter_dist:
        ow = _round_up(3 * NC, 128)
        rhs = jnp.zeros((C, ow), jnp.float32)
        rhs = rhs.at[:, 0:NC].set(jnp.tile(params["w_fc_t"], (3, 1)))
        rhs = rhs.at[0:2 * F, NC:2 * NC].set(jnp.tile(params["w_hand_fc_t"], (2, 1)))
        rhs = rhs.at[2 * F:3 * F, 2 * NC:3 * NC].set(params["w_body_fc_t"])
        bias = jnp.zeros((1, ow), jnp.float32)
        bias = bias.at[:, 0:NC].set(params["b_fc"])
        bias = bias.at[:, NC:2 * NC].set(params["b_hand_fc"])
        bias = bias.at[:, 2 * NC:3 * NC].set(params["b_body_fc"])
        slices = (slice(0, NC), slice(NC, 2 * NC), slice(2 * NC, 3 * NC))
    else:
        ow = _round_up(NC + 2 * F, 128)
        rhs = jnp.zeros((C, ow), jnp.float32)
        rhs = rhs.at[:, 0:NC].set(jnp.tile(params["w_fc_t"], (3, 1)))
        eye = jnp.eye(F, dtype=jnp.float32)
        rhs = rhs.at[0:F, NC:NC + F].set(eye)                 # pooled_h (right)
        rhs = rhs.at[F:2 * F, NC:NC + F].set(eye)             # pooled_h (left)
        rhs = rhs.at[2 * F:3 * F, NC + F:NC + 2 * F].set(eye)  # pooled_b
        bias = jnp.zeros((1, ow), jnp.float32).at[:, 0:NC].set(params["b_fc"])
        slices = (slice(0, NC), slice(NC, NC + F), slice(NC + F, NC + 2 * F))
    return wsel, rhs, bias, ow, slices


def single_word_classification(x, params, *, inter_dist=True, block_b=None):
    """x: (B, T, 3*F) float32.  Returns (pred, hand_out, body_out)."""
    B, T, C = x.shape
    F = params["w_hand"].shape[1]
    assert C == 3 * F, "C must equal 3 * in_channels"
    NC = params["w_fc_t"].shape[1]

    wsel, rhs, bias, ow, out_slices = _build_constants(params, F, NC, inter_dist)

    # Batch-block sizing: target ~8 MiB of x per block (double-buffered), cap
    # at 2048 rows.  On v7x make sure the ("parallel",) grid has >= 2 steps so
    # both TensorCores get work (only when B is large enough to matter).
    if block_b is None:
        per_ex_bytes = T * C * 4
        block_b = int(max(8, min(2048, (8 << 20) // max(per_ex_bytes, 1))))
        if B >= 16:
            half = _round_up(-(-B // 2), 8)
            block_b = min(block_b, half)
        block_b = min(block_b, B)
    if block_b < B:
        block_b = max(8, (block_b // 8) * 8)  # sublane-aligned output blocks
    n_blocks = pl.cdiv(B, block_b)
    # No host-side jnp.pad: partial last blocks are row-independent, so Pallas'
    # clipped loads/stores are safe.

    in_specs = [
        pl.BlockSpec((block_b, T, C), lambda i: (i, 0, 0)),          # x block
        pl.BlockSpec((C, 128), lambda i: (0, 0)),                    # W_sel
        pl.BlockSpec((C, ow), lambda i: (0, 0)),                     # fused heads
        pl.BlockSpec((1, ow), lambda i: (0, 0)),                     # fused bias
        pl.BlockSpec(memory_space=pltpu.MemorySpace.SMEM),           # b_hand
        pl.BlockSpec(memory_space=pltpu.MemorySpace.SMEM),           # b_body
    ]
    out_specs = pl.BlockSpec((block_b, ow), lambda i: (i, 0))
    out_shape = jax.ShapeDtypeStruct((B, ow), jnp.float32)

    out = pl.pallas_call(
        _make_kernel(F, C, T),
        grid=(n_blocks,),
        in_specs=in_specs,
        out_specs=out_specs,
        out_shape=out_shape,
        compiler_params=pltpu.CompilerParams(
            dimension_semantics=("parallel",),
            vmem_limit_bytes=40 << 20),
    )(x, wsel, rhs, bias, params["b_hand"], params["b_body"])

    pred = out[:, out_slices[0]]
    hand_out = out[:, out_slices[1]]
    body_out = out[:, out_slices[2]]
    return pred, hand_out, body_out


def reference(x, params, *, inter_dist=True):
    """Pure-JAX reference matching the PyTorch forward (mask=None, eval-mode)."""
    B, T, C = x.shape
    F = params["w_hand"].shape[1]
    right, left, body = x[:, :, :F], x[:, :, F:2 * F], x[:, :, 2 * F:]
    hand = jnp.concatenate([right, left], axis=1)                       # (B, 2T, F)

    w_h = jnp.einsum('btf,of->bto', hand, params["w_hand"]) + params["b_hand"][0]
    w_h = jax.nn.softmax(w_h, axis=1)
    pooled_h = jnp.einsum('btf,bto->bf', hand, w_h)

    w_b = jnp.einsum('btf,of->bto', body, params["w_body"]) + params["b_body"][0]
    w_b = jax.nn.softmax(w_b, axis=1)
    pooled_b = jnp.einsum('btf,bto->bf', body, w_b)

    feat = pooled_h + pooled_b
    pred = feat @ params["w_fc_t"] + params["b_fc"][0]
    if inter_dist:
        return (pred,
                pooled_h @ params["w_hand_fc_t"] + params["b_hand_fc"][0],
                pooled_b @ params["w_body_fc_t"] + params["b_body_fc"][0])
    return pred, pooled_h, pooled_b


def init_params(key, in_channels, num_class):
    ks = jax.random.split(key, 10)
    s = 1.0 / np.sqrt(in_channels)
    return {
        "w_hand": jax.random.uniform(ks[0], (1, in_channels), jnp.float32, -s, s),
        "b_hand": jax.random.uniform(ks[1], (1, 1), jnp.float32, -s, s),
        "w_body": jax.random.uniform(ks[2], (1, in_channels), jnp.float32, -s, s),
        "b_body": jax.random.uniform(ks[3], (1, 1), jnp.float32, -s, s),
        "w_fc_t": jax.random.uniform(ks[4], (in_channels, num_class), jnp.float32, -s, s),
        "b_fc": jax.random.uniform(ks[5], (1, num_class), jnp.float32, -s, s),
        "w_hand_fc_t": jax.random.uniform(ks[6], (in_channels, num_class), jnp.float32, -s, s),
        "b_hand_fc": jax.random.uniform(ks[7], (1, num_class), jnp.float32, -s, s),
        "w_body_fc_t": jax.random.uniform(ks[8], (in_channels, num_class), jnp.float32, -s, s),
        "b_body_fc": jax.random.uniform(ks[9], (1, num_class), jnp.float32, -s, s),
    }


if __name__ == "__main__":
    # small shapes consistent with the module: B=2, T=8, in_channels=32 -> C=96
    B, T, IN_CHANNELS, NUM_CLASS = 2, 8, 32, 10
    key = jax.random.PRNGKey(0)
    kx, kp = jax.random.split(key)
    x = jax.random.normal(kx, (B, T, 3 * IN_CHANNELS), dtype=jnp.float32)
    params = init_params(kp, IN_CHANNELS, NUM_CLASS)

    fn = jax.jit(functools.partial(single_word_classification, inter_dist=True))
    pred, hand_out, body_out = fn(x, params)
    jax.block_until_ready((pred, hand_out, body_out))

    ref_pred, ref_hand, ref_body = reference(x, params, inter_dist=True)
    np.testing.assert_allclose(np.asarray(pred), np.asarray(ref_pred), rtol=1e-4, atol=1e-4)
    np.testing.assert_allclose(np.asarray(hand_out), np.asarray(ref_hand), rtol=1e-4, atol=1e-4)
    np.testing.assert_allclose(np.asarray(body_out), np.asarray(ref_body), rtol=1e-4, atol=1e-4)

    # Also exercise the inter_dist=False path once (pooled features returned).
    fn2 = jax.jit(functools.partial(single_word_classification, inter_dist=False))
    p2, h2, b2 = fn2(x, params)
    jax.block_until_ready((p2, h2, b2))
    r2 = reference(x, params, inter_dist=False)
    np.testing.assert_allclose(np.asarray(p2), np.asarray(r2[0]), rtol=1e-4, atol=1e-4)
    np.testing.assert_allclose(np.asarray(h2), np.asarray(r2[1]), rtol=1e-4, atol=1e-4)
    np.testing.assert_allclose(np.asarray(b2), np.asarray(r2[2]), rtol=1e-4, atol=1e-4)

    print("KERNEL_OK")
</pallas_src>

<mosaic_0001>
module attributes {stable_mosaic.version = 11 : i64} {
  func.func @kernel(%arg0: i32, %arg1: memref<2x8x96xf32, #tpu.memory_space<vmem>>, %arg2: memref<96x128xf32, #tpu.memory_space<vmem>>, %arg3: memref<96x128xf32, #tpu.memory_space<vmem>>, %arg4: memref<1x128xf32, #tpu.memory_space<vmem>>, %arg5: memref<1x1xf32, #tpu.memory_space<smem>>, %arg6: memref<1x1xf32, #tpu.memory_space<smem>>, %arg7: memref<2x128xf32, #tpu.memory_space<vmem>>) attributes {dimension_semantics = [#tpu.dimension_semantics<parallel>], iteration_bounds = array<i64: 1>, scalar_prefetch = 0 : i64, scratch_operands = 0 : i64, tpu.core_type = #tpu.core_type<tc>, window_params = [{transform_indices = @transform_0, window_bounds = array<i64: 2, 8, 96>}, {pipeline_mode = #tpu.pipeline_mode<synchronous>, transform_indices = @transform_1, window_bounds = array<i64: 96, 128>}, {pipeline_mode = #tpu.pipeline_mode<synchronous>, transform_indices = @transform_2, window_bounds = array<i64: 96, 128>}, {pipeline_mode = #tpu.pipeline_mode<synchronous>, transform_indices = @transform_3, window_bounds = array<i64: 1, 128>}, {transform_indices = @transform_4, window_bounds = array<i64: 1, 1>}, {transform_indices = @transform_5, window_bounds = array<i64: 1, 1>}, {transform_indices = @transform_6, window_bounds = array<i64: 2, 128>}]} {
    %c0 = arith.constant 0 : index
    %c0_0 = arith.constant 0 : index
    %c0_1 = arith.constant 0 : index
    %0 = vector.load %arg1[%c0, %c0_0, %c0_1] : memref<2x8x96xf32, #tpu.memory_space<vmem>>, vector<2x8x96xf32>
    %1 = vector.shape_cast %0 : vector<2x8x96xf32> to vector<16x96xf32>
    %c0_2 = arith.constant 0 : index
    %c0_3 = arith.constant 0 : index
    %2 = vector.load %arg2[%c0_2, %c0_3] : memref<96x128xf32, #tpu.memory_space<vmem>>, vector<96x128xf32>
    %cst = arith.constant dense<0.000000e+00> : vector<16x128xf32>
    %3 = tpu.matmul %1, %2, %cst {dimension_numbers = #tpu.dot_dimension_numbers<[1], [0], [0], [1], [0, 0, 1, 1], [], []>} : vector<16x96xf32>, vector<96x128xf32>, vector<16x128xf32> -> vector<16x128xf32>
    %4 = vector.shape_cast %3 : vector<16x128xf32> to vector<2x8x128xf32>
    %c0_4 = arith.constant 0 : index
    %c0_5 = arith.constant 0 : index
    %5 = memref.load %arg5[%c0_4, %c0_5] : memref<1x1xf32, #tpu.memory_space<smem>>
    %c0_6 = arith.constant 0 : index
    %c0_7 = arith.constant 0 : index
    %6 = memref.load %arg6[%c0_6, %c0_7] : memref<1x1xf32, #tpu.memory_space<smem>>
    %7 = vector.extract_strided_slice %4 {offsets = [0, 0, 0], sizes = [2, 8, 1], strides = [1, 1, 1]} : vector<2x8x128xf32> to vector<2x8x1xf32>
    %8 = vector.broadcast %5 : f32 to vector<2x8x1xf32>
    %9 = arith.addf %7, %8 : vector<2x8x1xf32>
    %10 = vector.extract_strided_slice %4 {offsets = [0, 0, 1], sizes = [2, 8, 1], strides = [1, 1, 1]} : vector<2x8x128xf32> to vector<2x8x1xf32>
    %11 = vector.broadcast %5 : f32 to vector<2x8x1xf32>
    %12 = arith.addf %10, %11 : vector<2x8x1xf32>
    %13 = vector.extract_strided_slice %4 {offsets = [0, 0, 2], sizes = [2, 8, 1], strides = [1, 1, 1]} : vector<2x8x128xf32> to vector<2x8x1xf32>
    %14 = vector.broadcast %6 : f32 to vector<2x8x1xf32>
    %15 = arith.addf %13, %14 : vector<2x8x1xf32>
    %cst_8 = arith.constant dense<0xFF800000> : vector<2x1xf32>
    %16 = vector.multi_reduction <maximumf>, %9, %cst_8 [1] : vector<2x8x1xf32> to vector<2x1xf32>
    %17 = vector.shape_cast %16 : vector<2x1xf32> to vector<2x1x1xf32>
    %cst_9 = arith.constant dense<0xFF800000> : vector<2x1xf32>
    %18 = vector.multi_reduction <maximumf>, %12, %cst_9 [1] : vector<2x8x1xf32> to vector<2x1xf32>
    %19 = vector.shape_cast %18 : vector<2x1xf32> to vector<2x1x1xf32>
    %20 = arith.maximumf %17, %19 : vector<2x1x1xf32>
    %21 = vector.broadcast %20 : vector<2x1x1xf32> to vector<2x8x1xf32>
    %22 = arith.subf %9, %21 : vector<2x8x1xf32>
    %23 = math.exp %22 : vector<2x8x1xf32>
    %24 = vector.broadcast %20 : vector<2x1x1xf32> to vector<2x8x1xf32>
    %25 = arith.subf %12, %24 : vector<2x8x1xf32>
    %26 = math.exp %25 : vector<2x8x1xf32>
    %cst_10 = arith.constant dense<0.000000e+00> : vector<2x1xf32>
    %27 = vector.multi_reduction <add>, %23, %cst_10 [1] : vector<2x8x1xf32> to vector<2x1xf32>
    %28 = vector.shape_cast %27 : vector<2x1xf32> to vector<2x1x1xf32>
    %cst_11 = arith.constant dense<0.000000e+00> : vector<2x1xf32>
    %29 = vector.multi_reduction <add>, %26, %cst_11 [1] : vector<2x8x1xf32> to vector<2x1xf32>
    %30 = vector.shape_cast %29 : vector<2x1xf32> to vector<2x1x1xf32>
    %31 = arith.addf %28, %30 : vector<2x1x1xf32>
    %cst_12 = arith.constant 1.000000e+00 : f32
    %32 = vector.broadcast %cst_12 : f32 to vector<2x1x1xf32>
    %33 = arith.divf %32, %31 : vector<2x1x1xf32>
    %34 = vector.broadcast %33 : vector<2x1x1xf32> to vector<2x8x1xf32>
    %35 = arith.mulf %23, %34 : vector<2x8x1xf32>
    %36 = vector.broadcast %33 : vector<2x1x1xf32> to vector<2x8x1xf32>
    %37 = arith.mulf %26, %36 : vector<2x8x1xf32>
    %cst_13 = arith.constant dense<0xFF800000> : vector<2x1xf32>
    %38 = vector.multi_reduction <maximumf>, %15, %cst_13 [1] : vector<2x8x1xf32> to vector<2x1xf32>
    %39 = vector.shape_cast %38 : vector<2x1xf32> to vector<2x1x1xf32>
    %40 = vector.broadcast %39 : vector<2x1x1xf32> to vector<2x8x1xf32>
    %41 = arith.subf %15, %40 : vector<2x8x1xf32>
    %42 = math.exp %41 : vector<2x8x1xf32>
    %cst_14 = arith.constant dense<0.000000e+00> : vector<2x1xf32>
    %43 = vector.multi_reduction <add>, %42, %cst_14 [1] : vector<2x8x1xf32> to vector<2x1xf32>
    %44 = vector.shape_cast %43 : vector<2x1xf32> to vector<2x1x1xf32>
    %cst_15 = arith.constant 1.000000e+00 : f32
    %45 = vector.broadcast %cst_15 : f32 to vector<2x1x1xf32>
    %46 = arith.divf %45, %44 : vector<2x1x1xf32>
    %47 = vector.broadcast %46 : vector<2x1x1xf32> to vector<2x8x1xf32>
    %48 = arith.mulf %42, %47 : vector<2x8x1xf32>
    %49 = tpu.iota {dimensions = array<i32: 2>} : vector<1x1x96xi32>
    %c32_i32 = arith.constant 32 : i32
    %50 = vector.broadcast %c32_i32 : i32 to vector<1x1x96xi32>
    %51 = arith.cmpi slt, %49, %50 : vector<1x1x96xi32>
    %c64_i32 = arith.constant 64 : i32
    %52 = vector.broadcast %c64_i32 : i32 to vector<1x1x96xi32>
    %53 = arith.cmpi slt, %49, %52 : vector<1x1x96xi32>
    %54 = vector.shape_cast %53 : vector<1x1x96xi1> to vector<1x1x96xi1>
    %55 = vector.broadcast %54 : vector<1x1x96xi1> to vector<2x8x96xi1>
    %56 = vector.shape_cast %37 : vector<2x8x1xf32> to vector<2x8x1xf32>
    %57 = vector.broadcast %56 : vector<2x8x1xf32> to vector<2x8x96xf32>
    %58 = vector.shape_cast %48 : vector<2x8x1xf32> to vector<2x8x1xf32>
    %59 = vector.broadcast %58 : vector<2x8x1xf32> to vector<2x8x96xf32>
    %60 = arith.select %55, %57, %59 : vector<2x8x96xi1>, vector<2x8x96xf32>
    %61 = vector.shape_cast %51 : vector<1x1x96xi1> to vector<1x1x96xi1>
    %62 = vector.broadcast %61 : vector<1x1x96xi1> to vector<2x8x96xi1>
    %63 = vector.shape_cast %35 : vector<2x8x1xf32> to vector<2x8x1xf32>
    %64 = vector.broadcast %63 : vector<2x8x1xf32> to vector<2x8x96xf32>
    %65 = arith.select %62, %64, %60 : vector<2x8x96xi1>, vector<2x8x96xf32>
    %66 = arith.mulf %0, %65 : vector<2x8x96xf32>
    %cst_16 = arith.constant dense<0.000000e+00> : vector<2x96xf32>
    %67 = vector.multi_reduction <add>, %66, %cst_16 [1] : vector<2x8x96xf32> to vector<2x96xf32>
    %c0_17 = arith.constant 0 : index
    %c0_18 = arith.constant 0 : index
    %68 = vector.load %arg3[%c0_17, %c0_18] : memref<96x128xf32, #tpu.memory_space<vmem>>, vector<96x128xf32>
    %cst_19 = arith.constant dense<0.000000e+00> : vector<2x128xf32>
    %69 = tpu.matmul %67, %68, %cst_19 {dimension_numbers = #tpu.dot_dimension_numbers<[1], [0], [0], [1], [0, 0, 1, 1], [], []>} : vector<2x96xf32>, vector<96x128xf32>, vector<2x128xf32> -> vector<2x128xf32>
    %c0_20 = arith.constant 0 : index
    %c0_21 = arith.constant 0 : index
    %70 = vector.load %arg4[%c0_20, %c0_21] : memref<1x128xf32, #tpu.memory_space<vmem>>, vector<1x128xf32>
    %71 = vector.broadcast %70 : vector<1x128xf32> to vector<2x128xf32>
    %72 = arith.addf %69, %71 : vector<2x128xf32>
    %c0_22 = arith.constant 0 : index
    %c0_23 = arith.constant 0 : index
    %73 = vector.load %arg7[%c0_22, %c0_23] : memref<2x128xf32, #tpu.memory_space<vmem>>, vector<2x128xf32>
    tpu.vector_store %arg7[%c0_22, %c0_23], %72 {strides = array<i32>} : memref<2x128xf32, #tpu.memory_space<vmem>>, vector<2x128xf32>,
    return
  }
  func.func @transform_0(%arg0: i32) -> (i32, i32, i32) {
    %c0_i32 = arith.constant 0 : i32
    %c0_i32_0 = arith.constant 0 : i32
    %c0_i32_1 = arith.constant 0 : i32
    return %arg0, %c0_i32, %c0_i32_0 : i32, i32, i32
  }
  func.func @transform_1(%arg0: i32) -> (i32, i32) {
    %c0_i32 = arith.constant 0 : i32
    %c0_i32_0 = arith.constant 0 : i32
    %c0_i32_1 = arith.constant 0 : i32
    return %c0_i32, %c0_i32_0 : i32, i32
  }
  func.func @transform_2(%arg0: i32) -> (i32, i32) {
    %c0_i32 = arith.constant 0 : i32
    %c0_i32_0 = arith.constant 0 : i32
    %c0_i32_1 = arith.constant 0 : i32
    return %c0_i32, %c0_i32_0 : i32, i32
  }
  func.func @transform_3(%arg0: i32) -> (i32, i32) {
    %c0_i32 = arith.constant 0 : i32
    %c0_i32_0 = arith.constant 0 : i32
    %c0_i32_1 = arith.constant 0 : i32
    return %c0_i32, %c0_i32_0 : i32, i32
  }
  func.func @transform_4(%arg0: i32) -> (i32, i32) {
    %c0_i32 = arith.constant 0 : i32
    %c0_i32_0 = arith.constant 0 : i32
    %c0_i32_1 = arith.constant 0 : i32
    return %c0_i32, %c0_i32_0 : i32, i32
  }
  func.func @transform_5(%arg0: i32) -> (i32, i32) {
    %c0_i32 = arith.constant 0 : i32
    %c0_i32_0 = arith.constant 0 : i32
    %c0_i32_1 = arith.constant 0 : i32
    return %c0_i32, %c0_i32_0 : i32, i32
  }
  func.func @transform_6(%arg0: i32) -> (i32, i32) {
    %c0_i32 = arith.constant 0 : i32
    %c0_i32_0 = arith.constant 0 : i32
    return %arg0, %c0_i32 : i32, i32
  }
}

</mosaic_0001>

<llo_original>
// kernel: single_word_classification.1
$region0: #{single_word_classification.1}
  #allocation0 [shape = 'u32[]', space=smem, size = 0x4, offset = 0x4, fixed_abs, tag = 'smem constant byte address 0x4 - core index']
  #allocation1 [shape = 'u32[72,128]{1,0:T(1,128)}', space=vmem, size = 0x9000, scoped, tag = 'internal scratch']
  #allocation2 [shape = 'f32[1,1]{1,0:T(1,128)S(6)}', space=smem, size = 0x200, scoped, tag = 'scoped memory for single_word_classification.1']
  #allocation3 [shape = 'f32[1,1]{1,0:T(1,128)S(6)}', space=smem, size = 0x200, scoped, tag = 'scoped memory for single_word_classification.1']
  %s0 = inlined_call_operand.vmem [shape: f32[2,8,96], index: 0, kind: input, shape index: {}]
  %s1 = inlined_call_operand.vmem [shape: f32[96,128], index: 1, kind: input, shape index: {}]
  %s2 = inlined_call_operand.vmem [shape: f32[96,128], index: 2, kind: input, shape index: {}]
  %s3 = inlined_call_operand.vmem [shape: f32[1,128], index: 3, kind: input, shape index: {}]
  %s4 = inlined_call_operand.<no memory space> [shape: f32[1,1], index: 4, kind: input, shape index: {}]
  %s5 = inlined_call_operand.<no memory space> [shape: f32[1,1], index: 5, kind: input, shape index: {}]
  %s6 = inlined_call_operand.vmem [shape: f32[2,128], index: 6, kind: output, shape index: {}]
  %s7 = sld [smem:[#allocation0]]
  $region34: #{single_word_classification.1} parent=0
    _
  %s9 = ssub.s32 1, %s7
  %s10 = scalar_select 0, %s9, %s7
  %11 = sst [smem:[#allocation2]] %s4
  %12 = sst [smem:[#allocation3]] %s5
  // Predicated region
  $region2: #{single_word_classification.1} parent=0 // pred_check
    _
  $region3: #{single_word_classification.1} parent=0 // pred_check_branch
    %14 = sbr.rel (0) target = $region5
  $region4: #{single_word_classification.1} parent=0 // pred_region
    _
  $region5: #{single_word_classification.1} parent=0 // pred_fallthru
    _
  // Predicated region
  $region6: #{single_word_classification.1} parent=0 // pred_check
    _
  $region7: #{single_word_classification.1} parent=0 // pred_check_branch
    %16 = sbr.rel (0) target = $region9
  $region8: #{single_word_classification.1} parent=0 // pred_region
    _
  $region9: #{single_word_classification.1} parent=0 // pred_fallthru
    _
  // Predicated region
  $region10: #{single_word_classification.1} parent=0 // pred_check
    _
  $region11: #{single_word_classification.1} parent=0 // pred_check_branch
    %18 = sbr.rel (0) target = $region13
  $region12: #{single_word_classification.1} parent=0 // pred_region
    _
  $region13: #{single_word_classification.1} parent=0 // pred_fallthru
    _
  // Predicated region
  $region14: #{single_word_classification.1} parent=0 // pred_check
    _
  $region15: #{single_word_classification.1} parent=0 // pred_check_branch
    %20 = sbr.rel (0) target = $region17
  $region16: #{single_word_classification.1} parent=0 // pred_region
    _
  $region17: #{single_word_classification.1} parent=0 // pred_fallthru
    _
  // Predicated region
  $region18: #{single_word_classification.1} parent=0 // pred_check
    _
  $region19: #{single_word_classification.1} parent=0 // pred_check_branch
    %22 = sbr.rel (0) target = $region21
  $region20: #{single_word_classification.1} parent=0 // pred_region
    _
  $region21: #{single_word_classification.1} parent=0 // pred_fallthru
    _
  // Predicated region
  $region22: #{single_word_classification.1} parent=0 // pred_check
    _
  $region23: #{single_word_classification.1} parent=0 // pred_check_branch
    %24 = sbr.rel (0) target = $region25
  $region24: #{single_word_classification.1} parent=0 // pred_region
    _
  $region25: #{single_word_classification.1} parent=0 // pred_fallthru
    _
  %v25 = vld [vmem:[%s0] sm:$0xff]
  %v26 = vld [vmem:[%s0 + $0x8] sm:$0xff]
  %v27 = vld [vmem:[%s1] sm:$0xff]
  %v28 = vld [vmem:[%s1 + $0x8] sm:$0xff]
  %v29 = vld [vmem:[%s1 + $0x10] sm:$0xff]
  %v30 = vld [vmem:[%s1 + $0x18] sm:$0xff]
  %v31 = vld [vmem:[%s1 + $0x20] sm:$0xff]
  %v32 = vld [vmem:[%s1 + $0x28] sm:$0xff]
  %v33 = vld [vmem:[%s1 + $0x30] sm:$0xff]
  %v34 = vld [vmem:[%s1 + $0x38] sm:$0xff]
  %v35 = vld [vmem:[%s1 + $0x40] sm:$0xff]
  %v36 = vld [vmem:[%s1 + $0x48] sm:$0xff]
  %v37 = vld [vmem:[%s1 + $0x50] sm:$0xff]
  %v38 = vld [vmem:[%s1 + $0x58] sm:$0xff]
  %vm39 = vcmask 785408
  %v41 = vsel %vm39, %v25, 0
  %v44 = vsel %vm39, %v26, 0
  %46 = vmatpush.msra.mxu0 0.0
  %47 = vmatpush.msra.mxu0 0.0
  %48 = vmatpush.msra.mxu0 0.0
  %49 = vmatpush.msra.mxu0 0.0
  %50 = vmatpush.msra.mxu0 %v38
  %51 = vmatpush.msra.mxu0 %v37
  %52 = vmatpush.msra.mxu0 %v36
  %53 = vmatpush.msra.mxu0 %v35
  %54 = vmatpush.msra.mxu0 %v34
  %55 = vmatpush.msra.mxu0 %v33
  %56 = vmatpush.msra.mxu0 %v32
  %57 = vmatpush.msra.mxu0 %v31
  %58 = vmatpush.msra.mxu0 %v30
  %59 = vmatpush.msra.mxu0 %v29
  %60 = vmatpush.msra.mxu0 %v28
  %61 = vmatpush.msra.mxu0 %v27
  %62 = vmatmul.f32.gmra.mxu0 %v41
  %v63 = vpop.f32.mrf.mxu0
  %v64 = vadd.f32 0.0, %v63
  %65 = vmatmul.f32.gmra.mxu0 %v44
  %v66 = vpop.f32.mrf.mxu0
  %v67 = vadd.f32 0.0, %v66
  %68 = vdwg.mxu0
  %s69 = sld [smem:[#allocation2]]
  %s70 = sld [smem:[#allocation3]]
  %v71 = vstv %s69
  %v72 = vadd.f32 %v64, %v71
  %v73 = vadd.f32 %v67, %v71
  %v74 = vstv %s70
  %v75 = vadd.f32 %v64, %v74
  %v76 = vadd.f32 %v67, %v74
  %vm77 = vcmask 7168
  %v78 = vsel %vm77, %v72, -inf
  %v79 = vrot.slane %v78, 4
  %v80 = vmax.f32 %v78, %v79
  %v81 = vrot.slane %v80, 2
  %v82 = vmax.f32 %v80, %v81
  %v83 = vrot.slane %v82, 1
  %v84 = vmax.f32 %v82, %v83
  %v85 = vsel %vm77, %v73, -inf
  %v86 = vrot.slane %v85, 4
  %v87 = vmax.f32 %v85, %v86
  %v88 = vrot.slane %v87, 2
  %v89 = vmax.f32 %v87, %v88
  %v90 = vrot.slane %v89, 1
  %v91 = vmax.f32 %v89, %v90
  %vm92 = vcmask 15368
  %v93 = vsel %vm92, %v72, -inf
  %v94 = vrot.slane %v93, 4
  %v95 = vmax.f32 %v93, %v94
  %v96 = vrot.slane %v95, 2
  %v97 = vmax.f32 %v95, %v96
  %v98 = vrot.slane %v97, 1
  %v99 = vmax.f32 %v97, %v98
  %v100 = vsel %vm92, %v73, -inf
  %v101 = vrot.slane %v100, 4
  %v102 = vmax.f32 %v100, %v101
  %v103 = vrot.slane %v102, 2
  %v104 = vmax.f32 %v102, %v103
  %v105 = vrot.slane %v104, 1
  %v106 = vmax.f32 %v104, %v105
  %109 = vrot.lane.b32.xlu0 %v99, 127
  %v110 = vpop.permute.xlu0 %109
  %111 = vrot.lane.b32.xlu0 %v106, 127
  %v112 = vpop.permute.xlu0 %111
  %v115 = vmax.f32 %v84, %v110
  %v116 = vmax.f32 %v91, %v112
  %v117 = vperm.slane %v115, 0
  %v118 = vperm.slane %v116, 0
  %v119 = vsub.f32 %v72, %v117
  %v120 = vsub.f32 %v73, %v118
  %v121 = vmul.f32 %v119, 1.442695
  %v122 = vpow.pop %v121
  %v123 = vmul.f32 %v120, 1.442695
  %v124 = vpow.pop %v123
  %127 = vrot.lane.b32.xlu0 %v117, 1
  %v128 = vpop.permute.xlu0 %127
  %129 = vrot.lane.b32.xlu0 %v118, 1
  %v130 = vpop.permute.xlu0 %129
  %v133 = vsub.f32 %v72, %v128
  %v134 = vsub.f32 %v73, %v130
  %v135 = vmul.f32 %v133, 1.442695
  %v136 = vpow.pop %v135
  %v137 = vmul.f32 %v134, 1.442695
  %v138 = vpow.pop %v137
  %v139 = vsel %vm77, %v122, 0.0
  %v140 = vrot.slane %v139, 4
  %v141 = vadd.f32 %v139, %v140
  %v142 = vrot.slane %v141, 2
  %v143 = vadd.f32 %v141, %v142
  %v144 = vrot.slane %v143, 1
  %v145 = vadd.f32 %v143, %v144
  %v146 = vsel %vm77, %v124, 0.0
  %v147 = vrot.slane %v146, 4
  %v148 = vadd.f32 %v146, %v147
  %v149 = vrot.slane %v148, 2
  %v150 = vadd.f32 %v148, %v149
  %v151 = vrot.slane %v150, 1
  %v152 = vadd.f32 %v150, %v151
  %v153 = vsel %vm92, %v136, 0.0
  %v154 = vrot.slane %v153, 4
  %v155 = vadd.f32 %v153, %v154
  %v156 = vrot.slane %v155, 2
  %v157 = vadd.f32 %v155, %v156
  %v158 = vrot.slane %v157, 1
  %v159 = vadd.f32 %v157, %v158
  %v160 = vsel %vm92, %v138, 0.0
  %v161 = vrot.slane %v160, 4
  %v162 = vadd.f32 %v160, %v161
  %v163 = vrot.slane %v162, 2
  %v164 = vadd.f32 %v162, %v163
  %v165 = vrot.slane %v164, 1
  %v166 = vadd.f32 %v164, %v165
  %169 = vrot.lane.b32.xlu0 %v159, 127
  %v170 = vpop.permute.xlu0 %169
  %171 = vrot.lane.b32.xlu0 %v166, 127
  %v172 = vpop.permute.xlu0 %171
  %v175 = vadd.f32 %v145, %v170
  %v176 = vadd.f32 %v152, %v172
  %v177 = vrcp.pop %v175
  %v178 = vmul.f32 %v175, %v177
  %v179 = vsub.f32 1.0, %v178
  %v180 = vmul.f32 %v177, %v179
  %v181 = vadd.f32 %v177, %v180
  %vm182 = vweird.f32 %v175
  %vm183 = vweird.f32 %v177
  %vm184 = vmor %vm182, %vm183
  %v185 = vsel %vm184, %v177, %v181
  %v186 = vand.u32 2147483647, %v175
  %vm187 = vcmp.eq.f32.partialorder %v186, 8.507059e+37
  %v188 = vand.u32 %v175, 2147483648
  %v189 = vor.u32 1.1754944e-38, %v188
  %v190 = vsel %vm187, %v189, %v185
  %v191 = vmul.f32 1.0, %v190
  %v192 = vrcp.pop %v176
  %v193 = vmul.f32 %v176, %v192
  %v194 = vsub.f32 1.0, %v193
  %v195 = vmul.f32 %v192, %v194
  %v196 = vadd.f32 %v192, %v195
  %vm197 = vweird.f32 %v176
  %vm198 = vweird.f32 %v192
  %vm199 = vmor %vm197, %vm198
  %v200 = vsel %vm199, %v192, %v196
  %v201 = vand.u32 2147483647, %v176
  %vm202 = vcmp.eq.f32.partialorder %v201, 8.507059e+37
  %v203 = vand.u32 %v176, 2147483648
  %v204 = vor.u32 1.1754944e-38, %v203
  %v205 = vsel %vm202, %v204, %v200
  %v206 = vmul.f32 1.0, %v205
  %v207 = vperm.slane %v191, 0
  %v208 = vperm.slane %v206, 0
  %v209 = vmul.f32 %v122, %v207
  %v210 = vmul.f32 %v124, %v208
  %213 = vrot.lane.b32.xlu0 %v207, 1
  %v214 = vpop.permute.xlu0 %213
  %215 = vrot.lane.b32.xlu0 %v208, 1
  %v216 = vpop.permute.xlu0 %215
  %v219 = vmul.f32 %v136, %v214
  %v220 = vmul.f32 %v138, %v216
  %vm221 = vcmask 23568
  %v222 = vsel %vm221, %v75, -inf
  %v223 = vrot.slane %v222, 4
  %v224 = vmax.f32 %v222, %v223
  %v225 = vrot.slane %v224, 2
  %v226 = vmax.f32 %v224, %v225
  %v227 = vrot.slane %v226, 1
  %v228 = vmax.f32 %v226, %v227
  %v229 = vsel %vm221, %v76, -inf
  %v230 = vrot.slane %v229, 4
  %v231 = vmax.f32 %v229, %v230
  %v232 = vrot.slane %v231, 2
  %v233 = vmax.f32 %v231, %v232
  %v234 = vrot.slane %v233, 1
  %v235 = vmax.f32 %v233, %v234
  %v236 = vsub.f32 %v75, %v228
  %v237 = vsub.f32 %v76, %v235
  %v238 = vmul.f32 %v236, 1.442695
  %v239 = vpow.pop %v238
  %v240 = vmul.f32 %v237, 1.442695
  %v241 = vpow.pop %v240
  %v242 = vsel %vm221, %v239, 0.0
  %v243 = vrot.slane %v242, 4
  %v244 = vadd.f32 %v242, %v243
  %v245 = vrot.slane %v244, 2
  %v246 = vadd.f32 %v244, %v245
  %v247 = vrot.slane %v246, 1
  %v248 = vadd.f32 %v246, %v247
  %v249 = vsel %vm221, %v241, 0.0
  %v250 = vrot.slane %v249, 4
  %v251 = vadd.f32 %v249, %v250
  %v252 = vrot.slane %v251, 2
  %v253 = vadd.f32 %v251, %v252
  %v254 = vrot.slane %v253, 1
  %v255 = vadd.f32 %v253, %v254
  %v256 = vrcp.pop %v248
  %v257 = vmul.f32 %v248, %v256
  %v258 = vsub.f32 1.0, %v257
  %v259 = vmul.f32 %v256, %v258
  %v260 = vadd.f32 %v256, %v259
  %vm261 = vweird.f32 %v248
  %vm262 = vweird.f32 %v256
  %vm263 = vmor %vm261, %vm262
  %v264 = vsel %vm263, %v256, %v260
  %v265 = vand.u32 2147483647, %v248
  %vm266 = vcmp.eq.f32.partialorder %v265, 8.507059e+37
  %v267 = vand.u32 %v248, 2147483648
  %v268 = vor.u32 1.1754944e-38, %v267
  %v269 = vsel %vm266, %v268, %v264
  %v270 = vmul.f32 1.0, %v269
  %v271 = vrcp.pop %v255
  %v272 = vmul.f32 %v255, %v271
  %v273 = vsub.f32 1.0, %v272
  %v274 = vmul.f32 %v271, %v273
  %v275 = vadd.f32 %v271, %v274
  %vm276 = vweird.f32 %v255
  %vm277 = vweird.f32 %v271
  %vm278 = vmor %vm276, %vm277
  %v279 = vsel %vm278, %v271, %v275
  %v280 = vand.u32 2147483647, %v255
  %vm281 = vcmp.eq.f32.partialorder %v280, 8.507059e+37
  %v282 = vand.u32 %v255, 2147483648
  %v283 = vor.u32 1.1754944e-38, %v282
  %v284 = vsel %vm281, %v283, %v279
  %v285 = vmul.f32 1.0, %v284
  %v286 = vmul.f32 %v239, %v270
  %v287 = vmul.f32 %v241, %v285
  %v288 = vlaneseq
  %v289 = vand.u32 %v288, 127
  %vm290 = vcmp.lt.s32.totalorder %v289, 32
  %vm291 = vcmp.lt.s32.totalorder %v289, 64
  %v292 = vsel %vm291, 1, 0
  %vm293 = vcmp.eq.s32.totalorder %v292, 1
  %295 = vset.pattern.permute.xlu0 1
  %296 = vperm.xlu0 %295, %v219
  %v297 = vpop.permute.xlu0 %296
  %300 = vset.pattern.permute.xlu0 1
  %301 = vperm.xlu0 %300, %v220
  %v302 = vpop.permute.xlu0 %301
  %305 = vset.pattern.permute.xlu0 2
  %306 = vperm.xlu0 %305, %v286
  %v307 = vpop.permute.xlu0 %306
  %310 = vset.pattern.permute.xlu0 2
  %311 = vperm.xlu0 %310, %v287
  %v312 = vpop.permute.xlu0 %311
  %v314 = vsel %vm293, %v297, %v307
  %v315 = vsel %vm293, %v302, %v312
  %v316 = vsel %vm290, 1, 0
  %vm317 = vcmp.eq.s32.totalorder %v316, 1
  %319 = vset.pattern.permute.xlu0 0
  %320 = vperm.xlu0 %319, %v209
  %v321 = vpop.permute.xlu0 %320
  %324 = vset.pattern.permute.xlu0 0
  %325 = vperm.xlu0 %324, %v210
  %v326 = vpop.permute.xlu0 %325
  %v328 = vsel %vm317, %v321, %v314
  %v329 = vsel %vm317, %v326, %v315
  %v330 = vmul.f32 %v25, %v328
  %v331 = vmul.f32 %v26, %v329
  %v332 = vsel %vm39, %v330, 0.0
  %v333 = vrot.slane %v332, 4
  %v334 = vadd.f32 %v332, %v333
  %v335 = vrot.slane %v334, 2
  %v336 = vadd.f32 %v334, %v335
  %v337 = vrot.slane %v336, 1
  %v338 = vadd.f32 %v336, %v337
  %v339 = vsel %vm39, %v331, 0.0
  %v340 = vrot.slane %v339, 4
  %v341 = vadd.f32 %v339, %v340
  %v342 = vrot.slane %v341, 2
  %v343 = vadd.f32 %v341, %v342
  %v344 = vrot.slane %v343, 1
  %v345 = vadd.f32 %v343, %v344
  %v346 = vld [vmem:[%s2] sm:$0xff]
  %v347 = vld [vmem:[%s2 + $0x8] sm:$0xff]
  %v348 = vld [vmem:[%s2 + $0x10] sm:$0xff]
  %v349 = vld [vmem:[%s2 + $0x18] sm:$0xff]
  %v350 = vld [vmem:[%s2 + $0x20] sm:$0xff]
  %v351 = vld [vmem:[%s2 + $0x28] sm:$0xff]
  %v352 = vld [vmem:[%s2 + $0x30] sm:$0xff]
  %v353 = vld [vmem:[%s2 + $0x38] sm:$0xff]
  %v354 = vld [vmem:[%s2 + $0x40] sm:$0xff]
  %v355 = vld [vmem:[%s2 + $0x48] sm:$0xff]
  %v356 = vld [vmem:[%s2 + $0x50] sm:$0xff]
  %v357 = vld [vmem:[%s2 + $0x58] sm:$0xff]
  %v358 = vld [vmem:[%s3] sm:$0x1]
  %v360 = vperm.slane %v358, 0
  %vm364 = vcmask 1041409
  %v365 = vsel %vm364, %v345, %v338
  %v366 = vsel %vm39, %v365, 0
  %368 = vmatpush.msra.mxu0 0.0
  %369 = vmatpush.msra.mxu0 0.0
  %370 = vmatpush.msra.mxu0 0.0
  %371 = vmatpush.msra.mxu0 0.0
  %372 = vmatpush.msra.mxu0 %v357
  %373 = vmatpush.msra.mxu0 %v356
  %374 = vmatpush.msra.mxu0 %v355
  %375 = vmatpush.msra.mxu0 %v354
  %376 = vmatpush.msra.mxu0 %v353
  %377 = vmatpush.msra.mxu0 %v352
  %378 = vmatpush.msra.mxu0 %v351
  %379 = vmatpush.msra.mxu0 %v350
  %380 = vmatpush.msra.mxu0 %v349
  %381 = vmatpush.msra.mxu0 %v348
  %382 = vmatpush.msra.mxu0 %v347
  %383 = vmatpush.msra.mxu0 %v346
  %384 = vmatmul.f32.gmra.mxu0 %v366
  %v385 = vpop.f32.mrf.mxu0
  %v386 = vadd.f32 %v360, %v385
  %387 = vdwg.mxu0
  %388 = vst [vmem:[%s6] sm:$0x3] %v386
  // Predicated region
  $region26: #{single_word_classification.1} parent=0 // pred_check
    _
  $region27: #{single_word_classification.1} parent=0 // pred_check_branch
    %390 = sbr.rel (0) target = $region29
  $region28: #{single_word_classification.1} parent=0 // pred_region
    _
  $region29: #{single_word_classification.1} parent=0 // pred_fallthru
    _
  // Predicated region
  $region30: #{single_word_classification.1} parent=0 // pred_check
    _
  $region31: #{single_word_classification.1} parent=0 // pred_check_branch
    %392 = sbr.rel (0) target = $region33
  $region32: #{single_word_classification.1} parent=0 // pred_region
    _
  $region33: #{single_word_classification.1} parent=0 // pred_fallthru
    _

</llo_original>
